<compile_context>
chip_gen: v7x
topology: tpu7x:2x2x1
jax: 0.10.0
libtpu: 0.0.40
codegen_flags: <defaults>
</compile_context>

<pallas_src>
import jax
import jax.numpy as jnp
from jax.experimental import pallas as pl
from jax.experimental.pallas import tpu as pltpu

_LANE = 128
_TARGET_BLOCK_BYTES = 2 * 1024 * 1024  # ~2 MiB of input per grid step


def _swish_kernel(x_ref, o_ref):
    # f32 internal compute; sigmoid(x) = 0.5 * (tanh(x/2) + 1)  (one EUP op).
    xf = x_ref[...].astype(jnp.float32)
    sig = 0.5 * (jnp.tanh(0.5 * xf) + 1.0)
    o_ref[...] = (xf * sig).astype(o_ref.dtype)


def _is_multi_tc_device():
    """True on TPU generations with >1 TensorCore per chip (v7x)."""
    try:
        kind = jax.devices()[0].device_kind.lower().replace(" ", "")
    except Exception:
        return False
    return ("v7" in kind) or ("7x" in kind)


def swish(x):
    """Elementwise swish: x * sigmoid(x). Matches torch's x * torch.sigmoid(x)."""
    orig_shape = x.shape
    dtype = x.dtype
    total = x.size
    if total == 0:
        return x

    itemsize = jnp.dtype(dtype).itemsize
    sub = max(8, 32 // max(itemsize, 1))  # sublane pack: 8 (32b), 16 (16b), 32 (8b)

    # Lane-dense slab: rows = cdiv(total, 128). Pad only the <=127-element tail.
    rows = pl.cdiv(total, _LANE)
    padded_total = rows * _LANE

    x_flat = x.reshape(-1)
    if padded_total != total:
        # swish(0) == 0 and the padded tail is sliced off below.
        x_flat = jnp.pad(x_flat, (0, padded_total - total))
    x2d = x_flat.reshape(rows, _LANE)

    # Block sized by bytes, rounded to the sublane pack; the ragged last block
    # is handled by Pallas (masked boundary writes), so rows are not padded up
    # to a multiple of the tile.
    target_rows = max(sub, _TARGET_BLOCK_BYTES // (_LANE * itemsize))
    row_tile = min(target_rows, rows)
    row_tile = -(-row_tile // sub) * sub
    num_steps = pl.cdiv(rows, row_tile)

    cost = pl.CostEstimate(
        flops=5 * total,
        transcendentals=total,
        bytes_accessed=2 * total * itemsize,
    )

    def run(dim_semantics):
        return pl.pallas_call(
            _swish_kernel,
            out_shape=jax.ShapeDtypeStruct((rows, _LANE), dtype),
            grid=(num_steps,),
            in_specs=[pl.BlockSpec((row_tile, _LANE), lambda i: (i, 0))],
            out_specs=pl.BlockSpec((row_tile, _LANE), lambda i: (i, 0)),
            compiler_params=pltpu.CompilerParams(
                dimension_semantics=dim_semantics,
                vmem_limit_bytes=32 * 1024 * 1024,
            ),
            cost_estimate=cost,
        )(x2d)

    if num_steps > 1 and _is_multi_tc_device():
        # v7x: split the streaming loop across both TensorCores.
        try:
            out = run((pltpu.CORE_PARALLEL,))
        except Exception:
            out = run(("parallel",))
    else:
        out = run(("parallel",))

    out_flat = out.reshape(-1)
    if padded_total != total:
        out_flat = out_flat[:total]
    return out_flat.reshape(orig_shape)


if __name__ == "__main__":
    key = jax.random.PRNGKey(0)
    k1, k2, k3 = jax.random.split(key, 3)

    # Primary shape implied by the module usage: NCHW (2, 4, 16, 16), f32.
    x = jax.random.normal(k1, (2, 4, 16, 16), dtype=jnp.float32)
    y = jax.block_until_ready(swish(x))
    y_ref = x * jax.nn.sigmoid(x)
    assert y.shape == x.shape and y.dtype == x.dtype
    assert jnp.allclose(y, y_ref, atol=1e-5, rtol=1e-5)

    # Non-128-aligned f32 shape that takes the multi-step ragged-block path.
    xl = jax.random.normal(k2, (1234, 567), dtype=jnp.float32)
    yl = jax.block_until_ready(swish(xl))
    yl_ref = xl * jax.nn.sigmoid(xl)
    assert yl.shape == xl.shape and yl.dtype == xl.dtype
    assert jnp.allclose(yl, yl_ref, atol=1e-5, rtol=1e-5)

    # bf16 path (f32 internal compute, cast back on store).
    xb = jax.random.normal(k3, (64, 129), dtype=jnp.bfloat16)
    yb = jax.block_until_ready(swish(xb))
    xbf = xb.astype(jnp.float32)
    yb_ref = xbf * jax.nn.sigmoid(xbf)
    assert yb.shape == xb.shape and yb.dtype == jnp.bfloat16
    assert jnp.allclose(yb.astype(jnp.float32), yb_ref, atol=2e-2, rtol=2e-2)

    print("KERNEL_OK")
</pallas_src>

<mosaic_0001>
module attributes {stable_mosaic.version = 11 : i64} {
  func.func @_swish_kernel(%arg0: i32, %arg1: memref<16x128xf32, #tpu.memory_space<vmem>>, %arg2: memref<16x128xf32, #tpu.memory_space<vmem>>) attributes {dimension_semantics = [#tpu.dimension_semantics<parallel>], iteration_bounds = array<i64: 1>, scalar_prefetch = 0 : i64, scratch_operands = 0 : i64, tpu.core_type = #tpu.core_type<tc>, window_params = [{transform_indices = @transform_0, window_bounds = array<i64: 16, 128>}, {transform_indices = @transform_1, window_bounds = array<i64: 16, 128>}]} {
    %c0 = arith.constant 0 : index
    %c0_0 = arith.constant 0 : index
    %0 = vector.load %arg1[%c0, %c0_0] : memref<16x128xf32, #tpu.memory_space<vmem>>, vector<16x128xf32>
    %cst = arith.constant 5.000000e-01 : f32
    %1 = vector.broadcast %cst : f32 to vector<16x128xf32>
    %2 = arith.mulf %1, %0 : vector<16x128xf32>
    %3 = math.tanh %2 : vector<16x128xf32>
    %cst_1 = arith.constant 1.000000e+00 : f32
    %4 = vector.broadcast %cst_1 : f32 to vector<16x128xf32>
    %5 = arith.addf %3, %4 : vector<16x128xf32>
    %cst_2 = arith.constant 5.000000e-01 : f32
    %6 = vector.broadcast %cst_2 : f32 to vector<16x128xf32>
    %7 = arith.mulf %6, %5 : vector<16x128xf32>
    %8 = arith.mulf %0, %7 : vector<16x128xf32>
    %c0_3 = arith.constant 0 : index
    %c0_4 = arith.constant 0 : index
    %9 = vector.load %arg2[%c0_3, %c0_4] : memref<16x128xf32, #tpu.memory_space<vmem>>, vector<16x128xf32>
    tpu.vector_store %arg2[%c0_3, %c0_4], %8 {strides = array<i32>} : memref<16x128xf32, #tpu.memory_space<vmem>>, vector<16x128xf32>,
    return
  }
  func.func @transform_0(%arg0: i32) -> (i32, i32) {
    %c0_i32 = arith.constant 0 : i32
    %c0_i32_0 = arith.constant 0 : i32
    return %arg0, %c0_i32 : i32, i32
  }
  func.func @transform_1(%arg0: i32) -> (i32, i32) {
    %c0_i32 = arith.constant 0 : i32
    %c0_i32_0 = arith.constant 0 : i32
    return %arg0, %c0_i32 : i32, i32
  }
}

</mosaic_0001>

<llo_original>
// kernel: tpu_custom_call.1
$region0: #{tpu_custom_call.1}
  #allocation0 [shape = 'u32[]', space=smem, size = 0x4, offset = 0x4, fixed_abs, tag = 'smem constant byte address 0x4 - core index']
  #allocation1 [shape = 'u32[144,128]{1,0:T(1,128)}', space=vmem, size = 0x12000, scoped, tag = 'internal scratch']
  %s0 = inlined_call_operand.hbm [shape: f32[16,128], index: 0, kind: input, shape index: {}]
  %s1 = inlined_call_operand.hbm [shape: f32[16,128], index: 1, kind: output, shape index: {}]
  %s2 = sld [smem:[#allocation0]]
  $region18: #{tpu_custom_call.1} parent=0
    _
  %s4 = ssub.s32 1, %s2
  %s5 = scalar_select 0, %s4, %s2
  $region1: #{tpu_custom_call.1} parent=0
    #allocation2 [shape = 'u8[8192]{0}', space=vmem, size = 0x2000, scoped, tag = 'input window, operand 0, single buffered']
    #allocation3 [shape = 's32[1]{0}', space=sflag, size = 0x4, scoped, tag = 'scoped memory for tpu_custom_call.1']
    #allocation4 [shape = 's32[1]{0}', space=sflag, size = 0x4, scoped, tag = 'scoped memory for tpu_custom_call.1']
    #allocation5 [shape = 'u8[8192]{0}', space=vmem, size = 0x2000, scoped, tag = 'output window, operand 0, single buffered']
    %6 = vsyncpa [#allocation3], 0
    %7 = vsyncpa [#allocation4], 0
    // Predicated region
    $region2: #{tpu_custom_call.1} parent=1 // pred_check
      _
    $region3: #{tpu_custom_call.1} parent=1 // pred_check_branch
      %9 = sbr.rel (0) target = $region5
    $region4: #{tpu_custom_call.1} parent=1 // pred_region
      %s11 = ssub.s32 256, 256
      %12 = vsyncadd [#allocation3], %s11
      %s13 = sshll.u32 [#allocation2], 4
      %s14 = int_to_ptr.vmem [resolvable:$true] %s13
      %19 = dma.hbm_to_vmem [thread:$0]  %s0, 256, %s14, [#allocation3], 128, 128, 8
    $region5: #{tpu_custom_call.1} parent=1 // pred_fallthru
      _
    // Predicated region
    $region6: #{tpu_custom_call.1} parent=1 // pred_check
      _
    $region7: #{tpu_custom_call.1} parent=1 // pred_check_branch
      %21 = sbr.rel (0) target = $region9
    $region8: #{tpu_custom_call.1} parent=1 // pred_region
      %22 = dma.done [#allocation3], 256
    $region9: #{tpu_custom_call.1} parent=1 // pred_fallthru
      _
    %v23 = vld [vmem:[#allocation2] sm:$0xff]
    %v24 = vld [vmem:[#allocation2 + $0x8] sm:$0xff]
    %v25 = vmul.f32 %v23, 0.5
    %v26 = vmul.f32 %v24, 0.5
    %v27 = vtanh.pop %v25
    %v28 = vtanh.pop %v26
    %v29 = vadd.f32 %v27, 1.0
    %v30 = vadd.f32 %v28, 1.0
    %v31 = vmul.f32 %v29, 0.5
    %v32 = vmul.f32 %v30, 0.5
    %v33 = vmul.f32 %v23, %v31
    %v34 = vmul.f32 %v24, %v32
    %35 = vst [vmem:[#allocation5] sm:$0xff] %v33
    %36 = vst [vmem:[#allocation5 + $0x8] sm:$0xff] %v34
    // Predicated region
    $region10: #{tpu_custom_call.1} parent=1 // pred_check
      _
    $region11: #{tpu_custom_call.1} parent=1 // pred_check_branch
      %38 = sbr.rel (0) target = $region13
    $region12: #{tpu_custom_call.1} parent=1 // pred_region
      %s40 = ssub.s32 256, 256
      %41 = vsyncadd [#allocation4], %s40
      %s42 = sshll.u32 [#allocation5], 4
      %s43 = int_to_ptr.vmem [resolvable:$true] %s42
      %48 = dma.vmem_to_hbm [thread:$0]  %s43, 256, %s1, [#allocation4], 128, 128, 8
    $region13: #{tpu_custom_call.1} parent=1 // pred_fallthru
      _
    // Predicated region
    $region14: #{tpu_custom_call.1} parent=1 // pred_check
      _
    $region15: #{tpu_custom_call.1} parent=1 // pred_check_branch
      %50 = sbr.rel (0) target = $region17
    $region16: #{tpu_custom_call.1} parent=1 // pred_region
      %51 = dma.done [#allocation4], 256
    $region17: #{tpu_custom_call.1} parent=1 // pred_fallthru
      _
    %52 = vsyncpa [#allocation3], 1
    %53 = vsyncpa [#allocation4], 1

</llo_original>
